<compile_context>
chip_gen: v7x
topology: tpu7x:2x2x1
jax: 0.10.0
libtpu: 0.0.40
codegen_flags: <defaults>
</compile_context>

<pallas_src>
import jax
import jax.numpy as jnp
from jax.experimental import pallas as pl
from jax.experimental.pallas import tpu as pltpu

# ----------------------- model config (small, synthetic) -----------------------
N, CIN, H, W = 2, 4, 16, 16
COUT, KH, KW = 8, 3, 3
PAD = 1                      # "same" padding for 3x3, stride 1

IN_LANES = W * CIN           # 64  : (w, cin) packed in the lane dim
OUT_LANES = W * COUT         # 128 : (w, cout) packed in the lane dim (lane-dense)


# ----------------------------- Pallas kernel -----------------------------------
def qat_conv_kernel(x_ref, w_ref, b_ref, o_ref):
    # QuantStub: identity in eager float mode -> no-op.
    # x_ref: (N, H + 2*PAD, W*CIN)   H-padded NHWC activation, lanes = (w, cin)
    # w_ref: (KH, W*CIN, W*COUT)     Toeplitz-expanded conv weight (kw taps and
    #                                width zero-padding folded in)
    # b_ref: (1, W*COUT)             bias tiled across w
    # o_ref: (N, H, W*COUT)
    for n in range(N):                       # unrolled, tiny batch
        acc = jnp.zeros((H, OUT_LANES), jnp.float32)
        for kh in range(KH):                 # unrolled 3-tap MXU accumulation
            acc = acc + jnp.dot(
                x_ref[n, kh:kh + H, :], w_ref[kh],
                preferred_element_type=jnp.float32)
        # DeQuantStub: identity -> no-op.
        o_ref[n] = (acc + b_ref[...]).astype(o_ref.dtype)


# ------------------------------ wrapper -----------------------------------------
def prepare_conv_params(weight_oihw, bias):
    """One-time weight prep: fold kw taps + width zero-padding into a Toeplitz matmul
    weight so the kernel needs no im2col along W at all."""
    # (COUT, CIN, KH, KW) -> (KH, KW, CIN, COUT)
    wt = jnp.transpose(weight_oihw, (2, 3, 1, 0)).astype(jnp.float32)
    # wmat[kh, wp, ci, w, co] = wt[kh, wp - w + PAD, ci, co]  if |wp - w| <= PAD else 0
    wmat = jnp.zeros((KH, W, CIN, W, COUT), jnp.float32)
    for kw in range(KW):
        dw = kw - PAD                                    # -1, 0, +1
        w_lo, w_hi = max(0, -dw), min(W, W - dw)
        n_w = w_hi - w_lo
        w_idx = jnp.arange(w_lo, w_hi)
        val = jnp.broadcast_to(wt[:, kw, :, :], (n_w, KH, CIN, COUT))
        wmat = wmat.at[:, w_idx + dw, :, w_idx, :].set(val)
    wmat2d = wmat.reshape(KH, IN_LANES, OUT_LANES)       # (3, 64, 128)
    b_slab = jnp.tile(bias, W).reshape(1, OUT_LANES)     # b_slab[0, w*COUT+co] = bias[co]
    return wmat2d, b_slab


@jax.jit
def qat_wrapper_forward(x_nchw, wmat2d, b_slab):
    """Forward of QATWrapper(Conv2d(4, 8, 3, padding=1)) — NCHW in, NCHW out."""
    # Layout plumbing only (PyTorch contract is NCHW): NCHW -> NHWC, pad H,
    # pack (w, cin) into the lane dim.  XLA fuses this into one small producer.
    x = jnp.transpose(x_nchw, (0, 2, 3, 1))                      # (N, H, W, CIN)
    x = jnp.pad(x, ((0, 0), (PAD, PAD), (0, 0), (0, 0)))         # (N, H+2, W, CIN)
    x_slab = x.reshape(N, H + 2 * PAD, IN_LANES)                 # (N, H+2, W*CIN)

    out_slab = pl.pallas_call(
        qat_conv_kernel,
        out_shape=jax.ShapeDtypeStruct((N, H, OUT_LANES), jnp.float32),
        # Full-array VMEM blocks, no grid: whole problem is ~125 KB of VMEM.
        in_specs=[
            pl.BlockSpec(memory_space=pltpu.VMEM),
            pl.BlockSpec(memory_space=pltpu.VMEM),
            pl.BlockSpec(memory_space=pltpu.VMEM),
        ],
        out_specs=pl.BlockSpec(memory_space=pltpu.VMEM),
    )(x_slab, wmat2d, b_slab)

    out_nhwc = out_slab.reshape(N, H, W, COUT)
    return jnp.transpose(out_nhwc, (0, 3, 1, 2))                 # back to NCHW


# ------------------------------- driver -----------------------------------------
if __name__ == "__main__":
    key = jax.random.PRNGKey(0)
    kx, kwt, kb = jax.random.split(key, 3)

    # PyTorch Conv2d default init: U(-1/sqrt(fan_in), +1/sqrt(fan_in))
    fan_in = CIN * KH * KW
    bound = 1.0 / (fan_in ** 0.5)
    weight = jax.random.uniform(kwt, (COUT, CIN, KH, KW), jnp.float32, -bound, bound)
    bias = jax.random.uniform(kb, (COUT,), jnp.float32, -bound, bound)

    x = jax.random.normal(kx, (N, CIN, H, W), jnp.float32)       # NCHW, like PyTorch

    wmat2d, b_slab = prepare_conv_params(weight, bias)           # one-time weight prep
    out = qat_wrapper_forward(x, wmat2d, b_slab)
    out = jax.block_until_ready(out)

    # Cross-check against XLA's conv (same semantics as the PyTorch module in float mode).
    ref = jax.lax.conv_general_dilated(
        x, weight, window_strides=(1, 1), padding=((PAD, PAD), (PAD, PAD)),
        dimension_numbers=("NCHW", "OIHW", "NCHW"),
    ) + bias.reshape(1, COUT, 1, 1)
    assert out.shape == (N, COUT, H, W)
    assert jnp.allclose(out, ref, atol=1e-4, rtol=1e-4)

    print("KERNEL_OK")
</pallas_src>

<mosaic_0001>
module attributes {stable_mosaic.version = 11 : i64} {
  func.func @qat_conv_kernel(%arg0: memref<2x18x64xf32, #tpu.memory_space<vmem>>, %arg1: memref<3x64x128xf32, #tpu.memory_space<vmem>>, %arg2: memref<1x128xf32, #tpu.memory_space<vmem>>, %arg3: memref<2x16x128xf32, #tpu.memory_space<vmem>>) attributes {dimension_semantics = [], scalar_prefetch = 0 : i64, scratch_operands = 0 : i64, tpu.core_type = #tpu.core_type<tc>} {
    %cst = arith.constant 0.000000e+00 : f32
    %0 = vector.broadcast %cst : f32 to vector<16x128xf32>
    %c0 = arith.constant 0 : index
    %c0_0 = arith.constant 0 : index
    %c0_1 = arith.constant 0 : index
    %1 = vector.load %arg0[%c0, %c0_0, %c0_1] : memref<2x18x64xf32, #tpu.memory_space<vmem>>, vector<1x16x64xf32>
    %2 = vector.shape_cast %1 : vector<1x16x64xf32> to vector<16x64xf32>
    %c0_2 = arith.constant 0 : index
    %c0_3 = arith.constant 0 : index
    %c0_4 = arith.constant 0 : index
    %3 = vector.load %arg1[%c0_2, %c0_3, %c0_4] : memref<3x64x128xf32, #tpu.memory_space<vmem>>, vector<1x64x128xf32>
    %4 = vector.shape_cast %3 : vector<1x64x128xf32> to vector<64x128xf32>
    %cst_5 = arith.constant dense<0.000000e+00> : vector<16x128xf32>
    %5 = tpu.matmul %2, %4, %cst_5 {dimension_numbers = #tpu.dot_dimension_numbers<[1], [0], [0], [1], [0, 0, 1, 1], [], []>} : vector<16x64xf32>, vector<64x128xf32>, vector<16x128xf32> -> vector<16x128xf32>
    %6 = arith.addf %0, %5 : vector<16x128xf32>
    %c0_6 = arith.constant 0 : index
    %c1 = arith.constant 1 : index
    %c0_7 = arith.constant 0 : index
    %7 = vector.load %arg0[%c0_6, %c1, %c0_7] : memref<2x18x64xf32, #tpu.memory_space<vmem>>, vector<1x16x64xf32>
    %8 = vector.shape_cast %7 : vector<1x16x64xf32> to vector<16x64xf32>
    %c1_8 = arith.constant 1 : index
    %c0_9 = arith.constant 0 : index
    %c0_10 = arith.constant 0 : index
    %9 = vector.load %arg1[%c1_8, %c0_9, %c0_10] : memref<3x64x128xf32, #tpu.memory_space<vmem>>, vector<1x64x128xf32>
    %10 = vector.shape_cast %9 : vector<1x64x128xf32> to vector<64x128xf32>
    %cst_11 = arith.constant dense<0.000000e+00> : vector<16x128xf32>
    %11 = tpu.matmul %8, %10, %cst_11 {dimension_numbers = #tpu.dot_dimension_numbers<[1], [0], [0], [1], [0, 0, 1, 1], [], []>} : vector<16x64xf32>, vector<64x128xf32>, vector<16x128xf32> -> vector<16x128xf32>
    %12 = arith.addf %6, %11 : vector<16x128xf32>
    %c0_12 = arith.constant 0 : index
    %c2 = arith.constant 2 : index
    %c0_13 = arith.constant 0 : index
    %13 = vector.load %arg0[%c0_12, %c2, %c0_13] : memref<2x18x64xf32, #tpu.memory_space<vmem>>, vector<1x16x64xf32>
    %14 = vector.shape_cast %13 : vector<1x16x64xf32> to vector<16x64xf32>
    %c2_14 = arith.constant 2 : index
    %c0_15 = arith.constant 0 : index
    %c0_16 = arith.constant 0 : index
    %15 = vector.load %arg1[%c2_14, %c0_15, %c0_16] : memref<3x64x128xf32, #tpu.memory_space<vmem>>, vector<1x64x128xf32>
    %16 = vector.shape_cast %15 : vector<1x64x128xf32> to vector<64x128xf32>
    %cst_17 = arith.constant dense<0.000000e+00> : vector<16x128xf32>
    %17 = tpu.matmul %14, %16, %cst_17 {dimension_numbers = #tpu.dot_dimension_numbers<[1], [0], [0], [1], [0, 0, 1, 1], [], []>} : vector<16x64xf32>, vector<64x128xf32>, vector<16x128xf32> -> vector<16x128xf32>
    %18 = arith.addf %12, %17 : vector<16x128xf32>
    %c0_18 = arith.constant 0 : index
    %c0_19 = arith.constant 0 : index
    %19 = vector.load %arg2[%c0_18, %c0_19] : memref<1x128xf32, #tpu.memory_space<vmem>>, vector<1x128xf32>
    %20 = vector.broadcast %19 : vector<1x128xf32> to vector<16x128xf32>
    %21 = arith.addf %18, %20 : vector<16x128xf32>
    %c0_20 = arith.constant 0 : index
    %c0_21 = arith.constant 0 : index
    %c0_22 = arith.constant 0 : index
    %22 = vector.load %arg3[%c0_20, %c0_21, %c0_22] : memref<2x16x128xf32, #tpu.memory_space<vmem>>, vector<1x16x128xf32>
    %23 = vector.shape_cast %22 : vector<1x16x128xf32> to vector<16x128xf32>
    %24 = vector.shape_cast %21 : vector<16x128xf32> to vector<1x16x128xf32>
    tpu.vector_store %arg3[%c0_20, %c0_21, %c0_22], %24 {strides = array<i32>} : memref<2x16x128xf32, #tpu.memory_space<vmem>>, vector<1x16x128xf32>,
    %cst_23 = arith.constant 0.000000e+00 : f32
    %25 = vector.broadcast %cst_23 : f32 to vector<16x128xf32>
    %c1_24 = arith.constant 1 : index
    %c0_25 = arith.constant 0 : index
    %c0_26 = arith.constant 0 : index
    %26 = vector.load %arg0[%c1_24, %c0_25, %c0_26] : memref<2x18x64xf32, #tpu.memory_space<vmem>>, vector<1x16x64xf32>
    %27 = vector.shape_cast %26 : vector<1x16x64xf32> to vector<16x64xf32>
    %c0_27 = arith.constant 0 : index
    %c0_28 = arith.constant 0 : index
    %c0_29 = arith.constant 0 : index
    %28 = vector.load %arg1[%c0_27, %c0_28, %c0_29] : memref<3x64x128xf32, #tpu.memory_space<vmem>>, vector<1x64x128xf32>
    %29 = vector.shape_cast %28 : vector<1x64x128xf32> to vector<64x128xf32>
    %cst_30 = arith.constant dense<0.000000e+00> : vector<16x128xf32>
    %30 = tpu.matmul %27, %29, %cst_30 {dimension_numbers = #tpu.dot_dimension_numbers<[1], [0], [0], [1], [0, 0, 1, 1], [], []>} : vector<16x64xf32>, vector<64x128xf32>, vector<16x128xf32> -> vector<16x128xf32>
    %31 = arith.addf %25, %30 : vector<16x128xf32>
    %c1_31 = arith.constant 1 : index
    %c1_32 = arith.constant 1 : index
    %c0_33 = arith.constant 0 : index
    %32 = vector.load %arg0[%c1_31, %c1_32, %c0_33] : memref<2x18x64xf32, #tpu.memory_space<vmem>>, vector<1x16x64xf32>
    %33 = vector.shape_cast %32 : vector<1x16x64xf32> to vector<16x64xf32>
    %c1_34 = arith.constant 1 : index
    %c0_35 = arith.constant 0 : index
    %c0_36 = arith.constant 0 : index
    %34 = vector.load %arg1[%c1_34, %c0_35, %c0_36] : memref<3x64x128xf32, #tpu.memory_space<vmem>>, vector<1x64x128xf32>
    %35 = vector.shape_cast %34 : vector<1x64x128xf32> to vector<64x128xf32>
    %cst_37 = arith.constant dense<0.000000e+00> : vector<16x128xf32>
    %36 = tpu.matmul %33, %35, %cst_37 {dimension_numbers = #tpu.dot_dimension_numbers<[1], [0], [0], [1], [0, 0, 1, 1], [], []>} : vector<16x64xf32>, vector<64x128xf32>, vector<16x128xf32> -> vector<16x128xf32>
    %37 = arith.addf %31, %36 : vector<16x128xf32>
    %c1_38 = arith.constant 1 : index
    %c2_39 = arith.constant 2 : index
    %c0_40 = arith.constant 0 : index
    %38 = vector.load %arg0[%c1_38, %c2_39, %c0_40] : memref<2x18x64xf32, #tpu.memory_space<vmem>>, vector<1x16x64xf32>
    %39 = vector.shape_cast %38 : vector<1x16x64xf32> to vector<16x64xf32>
    %c2_41 = arith.constant 2 : index
    %c0_42 = arith.constant 0 : index
    %c0_43 = arith.constant 0 : index
    %40 = vector.load %arg1[%c2_41, %c0_42, %c0_43] : memref<3x64x128xf32, #tpu.memory_space<vmem>>, vector<1x64x128xf32>
    %41 = vector.shape_cast %40 : vector<1x64x128xf32> to vector<64x128xf32>
    %cst_44 = arith.constant dense<0.000000e+00> : vector<16x128xf32>
    %42 = tpu.matmul %39, %41, %cst_44 {dimension_numbers = #tpu.dot_dimension_numbers<[1], [0], [0], [1], [0, 0, 1, 1], [], []>} : vector<16x64xf32>, vector<64x128xf32>, vector<16x128xf32> -> vector<16x128xf32>
    %43 = arith.addf %37, %42 : vector<16x128xf32>
    %c0_45 = arith.constant 0 : index
    %c0_46 = arith.constant 0 : index
    %44 = vector.load %arg2[%c0_45, %c0_46] : memref<1x128xf32, #tpu.memory_space<vmem>>, vector<1x128xf32>
    %45 = vector.broadcast %44 : vector<1x128xf32> to vector<16x128xf32>
    %46 = arith.addf %43, %45 : vector<16x128xf32>
    %c1_47 = arith.constant 1 : index
    %c0_48 = arith.constant 0 : index
    %c0_49 = arith.constant 0 : index
    %47 = vector.load %arg3[%c1_47, %c0_48, %c0_49] : memref<2x16x128xf32, #tpu.memory_space<vmem>>, vector<1x16x128xf32>
    %48 = vector.shape_cast %47 : vector<1x16x128xf32> to vector<16x128xf32>
    %49 = vector.shape_cast %46 : vector<16x128xf32> to vector<1x16x128xf32>
    tpu.vector_store %arg3[%c1_47, %c0_48, %c0_49], %49 {strides = array<i32>} : memref<2x16x128xf32, #tpu.memory_space<vmem>>, vector<1x16x128xf32>,
    return
  }
}

</mosaic_0001>

<llo_original>
// kernel: qat_wrapper_forward.1
$region0: #{qat_wrapper_forward.1}
  #allocation0 [shape = 'u32[]', space=smem, size = 0x4, offset = 0x4, fixed_abs, tag = 'smem constant byte address 0x4 - core index']
  #allocation1 [shape = 'u32[144,128]{1,0:T(1,128)}', space=vmem, size = 0x12000, scoped, tag = 'internal scratch']
  %s0 = inlined_call_operand.vmem [shape: f32[2,18,64], index: 0, kind: input, shape index: {}]
  %s1 = inlined_call_operand.vmem [shape: f32[3,64,128], index: 1, kind: input, shape index: {}]
  %s2 = inlined_call_operand.vmem [shape: f32[1,128], index: 2, kind: input, shape index: {}]
  %s3 = inlined_call_operand.vmem [shape: f32[2,16,128], index: 3, kind: output, shape index: {}]
  %s4 = sld [smem:[#allocation0]]
  $region22: #{qat_wrapper_forward.1} parent=0
    _
  %s6 = ssub.s32 1, %s4
  %s7 = scalar_select 0, %s6, %s4
  // Predicated region
  $region2: #{qat_wrapper_forward.1} parent=0 // pred_check
    _
  $region3: #{qat_wrapper_forward.1} parent=0 // pred_check_branch
    %9 = sbr.rel (0) target = $region5
  $region4: #{qat_wrapper_forward.1} parent=0 // pred_region
    _
  $region5: #{qat_wrapper_forward.1} parent=0 // pred_fallthru
    _
  // Predicated region
  $region6: #{qat_wrapper_forward.1} parent=0 // pred_check
    _
  $region7: #{qat_wrapper_forward.1} parent=0 // pred_check_branch
    %11 = sbr.rel (0) target = $region9
  $region8: #{qat_wrapper_forward.1} parent=0 // pred_region
    _
  $region9: #{qat_wrapper_forward.1} parent=0 // pred_fallthru
    _
  // Predicated region
  $region10: #{qat_wrapper_forward.1} parent=0 // pred_check
    _
  $region11: #{qat_wrapper_forward.1} parent=0 // pred_check_branch
    %13 = sbr.rel (0) target = $region13
  $region12: #{qat_wrapper_forward.1} parent=0 // pred_region
    _
  $region13: #{qat_wrapper_forward.1} parent=0 // pred_fallthru
    _
  %v14 = vld [vmem:[%s0] sm:$0xff]
  %v15 = vld [vmem:[%s0 + $0x8] sm:$0xff]
  %v16 = vld [vmem:[%s1] sm:$0xff]
  %v17 = vld [vmem:[%s1 + $0x8] sm:$0xff]
  %v18 = vld [vmem:[%s1 + $0x10] sm:$0xff]
  %v19 = vld [vmem:[%s1 + $0x18] sm:$0xff]
  %v20 = vld [vmem:[%s1 + $0x20] sm:$0xff]
  %v21 = vld [vmem:[%s1 + $0x28] sm:$0xff]
  %v22 = vld [vmem:[%s1 + $0x30] sm:$0xff]
  %v23 = vld [vmem:[%s1 + $0x38] sm:$0xff]
  %v24 = vld [vmem:[%s0 + $0x1] sm:$0xff]
  %v25 = vld [vmem:[%s0 + $0x9] sm:$0xff]
  %s26 = scalar_lea.vmem %s1, 64
  %v27 = vld [vmem:[%s26] sm:$0xff]
  %v28 = vld [vmem:[%s26 + $0x8] sm:$0xff]
  %v29 = vld [vmem:[%s26 + $0x10] sm:$0xff]
  %v30 = vld [vmem:[%s26 + $0x18] sm:$0xff]
  %v31 = vld [vmem:[%s26 + $0x20] sm:$0xff]
  %v32 = vld [vmem:[%s26 + $0x28] sm:$0xff]
  %v33 = vld [vmem:[%s26 + $0x30] sm:$0xff]
  %v34 = vld [vmem:[%s26 + $0x38] sm:$0xff]
  %vm35 = vcmask 523264
  %v37 = vsel %vm35, %v24, 0
  %v40 = vsel %vm35, %v25, 0
  %42 = vmatprep.subr.mxu0 0.0
  %43 = vmatpush1.msra.mxu0 %v27
  %44 = vmatprep.subr.mxu0 0.0
  %45 = vmatpush1.msra.mxu0 %v28
  %46 = vmatprep.subr.mxu0 0.0
  %47 = vmatpush1.msra.mxu0 %v29
  %48 = vmatprep.subr.mxu0 0.0
  %49 = vmatpush1.msra.mxu0 %v30
  %50 = vmatprep.subr.mxu0 0.0
  %51 = vmatpush1.msra.mxu0 %v31
  %52 = vmatprep.subr.mxu0 0.0
  %53 = vmatpush1.msra.mxu0 %v32
  %54 = vmatprep.subr.mxu0 0.0
  %55 = vmatpush1.msra.mxu0 %v33
  %56 = vmatprep.subr.mxu0 0.0
  %57 = vmatpush1.msra.mxu0 %v34
  %58 = vmatprep.subr.mxu0 0.0
  %59 = vmatpush1.msra.mxu0 0.0
  %60 = vmatprep.subr.mxu0 0.0
  %61 = vmatpush1.msra.mxu0 0.0
  %62 = vmatprep.subr.mxu0 0.0
  %63 = vmatpush1.msra.mxu0 0.0
  %64 = vmatprep.subr.mxu0 0.0
  %65 = vmatpush1.msra.mxu0 0.0
  %66 = vmatprep.subr.mxu0 0.0
  %67 = vmatpush1.msra.mxu0 0.0
  %68 = vmatprep.subr.mxu0 0.0
  %69 = vmatpush1.msra.mxu0 0.0
  %70 = vmatprep.subr.mxu0 0.0
  %71 = vmatpush1.msra.mxu0 0.0
  %72 = vmatprep.subr.mxu0 0.0
  %73 = vmatpush1.msra.mxu0 0.0
  %74 = vmatprep.subr.mxu0 0.0
  %75 = vmatpush1.msra.mxu0 0.0
  %76 = vmatprep.subr.mxu0 0.0
  %77 = vmatpush1.msra.mxu0 0.0
  %78 = vmatprep.subr.mxu0 0.0
  %79 = vmatpush1.msra.mxu0 0.0
  %80 = vmatprep.subr.mxu0 0.0
  %81 = vmatpush1.msra.mxu0 0.0
  %82 = vmatprep.subr.mxu0 0.0
  %83 = vmatpush1.msra.mxu0 0.0
  %84 = vmatprep.subr.mxu0 0.0
  %85 = vmatpush1.msra.mxu0 0.0
  %86 = vmatprep.subr.mxu0 0.0
  %87 = vmatpush1.msra.mxu0 0.0
  %88 = vmatprep.subr.mxu0 0.0
  %89 = vmatpush1.msra.mxu0 0.0
  %90 = vmatprep.subr.mxu0 0.0
  %91 = vmatpush1.msra.mxu0 0.0
  %92 = vmatprep.subr.mxu0 0.0
  %93 = vmatpush1.msra.mxu0 0.0
  %94 = vmatprep.subr.mxu0 0.0
  %95 = vmatpush1.msra.mxu0 0.0
  %96 = vmatprep.subr.mxu0 0.0
  %97 = vmatpush1.msra.mxu0 0.0
  %98 = vmatprep.subr.mxu0 0.0
  %99 = vmatpush1.msra.mxu0 0.0
  %100 = vmatprep.subr.mxu0 0.0
  %101 = vmatpush1.msra.mxu0 0.0
  %102 = vmatprep.subr.mxu0 0.0
  %103 = vmatpush1.msra.mxu0 0.0
  %104 = vmatprep.subr.mxu0 0.0
  %105 = vmatpush1.msra.mxu0 0.0
  %106 = vmatprep.mubr.f32.mxu0 0.0
  %107 = vmatmul.mubr.f32.gmra.mrb[0].mxu0 %v37
  %v108 = vpop.f32.mrb[0].mxu0
  %v109 = vadd.f32 0.0, %v108
  %v110 = vpop.f32.mrb[0].mxu0
  %111 = vmatprep.mubr.f32.mxu0 0.0
  %112 = vmatmul.mubr.f32.gmra.mrb[0].mxu0 %v40
  %v113 = vpop.f32.mrb[0].mxu0
  %v114 = vadd.f32 0.0, %v113
  %v115 = vpop.f32.mrb[0].mxu0
  %116 = vdwg.mxu0
  %v118 = vsel %vm35, %v14, 0
  %v121 = vsel %vm35, %v15, 0
  %123 = vmatprep.subr.mxu0 0.0
  %124 = vmatpush1.msra.mxu0 %v16
  %125 = vmatprep.subr.mxu0 0.0
  %126 = vmatpush1.msra.mxu0 %v17
  %127 = vmatprep.subr.mxu0 0.0
  %128 = vmatpush1.msra.mxu0 %v18
  %129 = vmatprep.subr.mxu0 0.0
  %130 = vmatpush1.msra.mxu0 %v19
  %131 = vmatprep.subr.mxu0 0.0
  %132 = vmatpush1.msra.mxu0 %v20
  %133 = vmatprep.subr.mxu0 0.0
  %134 = vmatpush1.msra.mxu0 %v21
  %135 = vmatprep.subr.mxu0 0.0
  %136 = vmatpush1.msra.mxu0 %v22
  %137 = vmatprep.subr.mxu0 0.0
  %138 = vmatpush1.msra.mxu0 %v23
  %139 = vmatprep.subr.mxu0 0.0
  %140 = vmatpush1.msra.mxu0 0.0
  %141 = vmatprep.subr.mxu0 0.0
  %142 = vmatpush1.msra.mxu0 0.0
  %143 = vmatprep.subr.mxu0 0.0
  %144 = vmatpush1.msra.mxu0 0.0
  %145 = vmatprep.subr.mxu0 0.0
  %146 = vmatpush1.msra.mxu0 0.0
  %147 = vmatprep.subr.mxu0 0.0
  %148 = vmatpush1.msra.mxu0 0.0
  %149 = vmatprep.subr.mxu0 0.0
  %150 = vmatpush1.msra.mxu0 0.0
  %151 = vmatprep.subr.mxu0 0.0
  %152 = vmatpush1.msra.mxu0 0.0
  %153 = vmatprep.subr.mxu0 0.0
  %154 = vmatpush1.msra.mxu0 0.0
  %155 = vmatprep.subr.mxu0 0.0
  %156 = vmatpush1.msra.mxu0 0.0
  %157 = vmatprep.subr.mxu0 0.0
  %158 = vmatpush1.msra.mxu0 0.0
  %159 = vmatprep.subr.mxu0 0.0
  %160 = vmatpush1.msra.mxu0 0.0
  %161 = vmatprep.subr.mxu0 0.0
  %162 = vmatpush1.msra.mxu0 0.0
  %163 = vmatprep.subr.mxu0 0.0
  %164 = vmatpush1.msra.mxu0 0.0
  %165 = vmatprep.subr.mxu0 0.0
  %166 = vmatpush1.msra.mxu0 0.0
  %167 = vmatprep.subr.mxu0 0.0
  %168 = vmatpush1.msra.mxu0 0.0
  %169 = vmatprep.subr.mxu0 0.0
  %170 = vmatpush1.msra.mxu0 0.0
  %171 = vmatprep.subr.mxu0 0.0
  %172 = vmatpush1.msra.mxu0 0.0
  %173 = vmatprep.subr.mxu0 0.0
  %174 = vmatpush1.msra.mxu0 0.0
  %175 = vmatprep.subr.mxu0 0.0
  %176 = vmatpush1.msra.mxu0 0.0
  %177 = vmatprep.subr.mxu0 0.0
  %178 = vmatpush1.msra.mxu0 0.0
  %179 = vmatprep.subr.mxu0 0.0
  %180 = vmatpush1.msra.mxu0 0.0
  %181 = vmatprep.subr.mxu0 0.0
  %182 = vmatpush1.msra.mxu0 0.0
  %183 = vmatprep.subr.mxu0 0.0
  %184 = vmatpush1.msra.mxu0 0.0
  %185 = vmatprep.subr.mxu0 0.0
  %186 = vmatpush1.msra.mxu0 0.0
  %187 = vmatprep.mubr.f32.mxu0 0.0
  %188 = vmatmul.mubr.f32.gmra.mrb[0].mxu0 %v118
  %v189 = vpop.f32.mrb[0].mxu0
  %v190 = vadd.f32 %v109, %v189
  %v191 = vpop.f32.mrb[0].mxu0
  %192 = vmatprep.mubr.f32.mxu0 0.0
  %193 = vmatmul.mubr.f32.gmra.mrb[0].mxu0 %v121
  %v194 = vpop.f32.mrb[0].mxu0
  %v195 = vadd.f32 %v114, %v194
  %v196 = vpop.f32.mrb[0].mxu0
  %197 = vdwg.mxu0
  %v198 = vld [vmem:[%s0 + $0x2] sm:$0xff]
  %v199 = vld [vmem:[%s0 + $0xa] sm:$0xff]
  %s200 = scalar_lea.vmem %s1, 128
  %v201 = vld [vmem:[%s200] sm:$0xff]
  %v202 = vld [vmem:[%s200 + $0x8] sm:$0xff]
  %v203 = vld [vmem:[%s200 + $0x10] sm:$0xff]
  %v204 = vld [vmem:[%s200 + $0x18] sm:$0xff]
  %v205 = vld [vmem:[%s200 + $0x20] sm:$0xff]
  %v206 = vld [vmem:[%s200 + $0x28] sm:$0xff]
  %v207 = vld [vmem:[%s200 + $0x30] sm:$0xff]
  %v208 = vld [vmem:[%s200 + $0x38] sm:$0xff]
  %v210 = vsel %vm35, %v198, 0
  %v213 = vsel %vm35, %v199, 0
  %215 = vmatprep.subr.mxu0 0.0
  %216 = vmatpush1.msra.mxu0 %v201
  %217 = vmatprep.subr.mxu0 0.0
  %218 = vmatpush1.msra.mxu0 %v202
  %219 = vmatprep.subr.mxu0 0.0
  %220 = vmatpush1.msra.mxu0 %v203
  %221 = vmatprep.subr.mxu0 0.0
  %222 = vmatpush1.msra.mxu0 %v204
  %223 = vmatprep.subr.mxu0 0.0
  %224 = vmatpush1.msra.mxu0 %v205
  %225 = vmatprep.subr.mxu0 0.0
  %226 = vmatpush1.msra.mxu0 %v206
  %227 = vmatprep.subr.mxu0 0.0
  %228 = vmatpush1.msra.mxu0 %v207
  %229 = vmatprep.subr.mxu0 0.0
  %230 = vmatpush1.msra.mxu0 %v208
  %231 = vmatprep.subr.mxu0 0.0
  %232 = vmatpush1.msra.mxu0 0.0
  %233 = vmatprep.subr.mxu0 0.0
  %234 = vmatpush1.msra.mxu0 0.0
  %235 = vmatprep.subr.mxu0 0.0
  %236 = vmatpush1.msra.mxu0 0.0
  %237 = vmatprep.subr.mxu0 0.0
  %238 = vmatpush1.msra.mxu0 0.0
  %239 = vmatprep.subr.mxu0 0.0
  %240 = vmatpush1.msra.mxu0 0.0
  %241 = vmatprep.subr.mxu0 0.0
  %242 = vmatpush1.msra.mxu0 0.0
  %243 = vmatprep.subr.mxu0 0.0
  %244 = vmatpush1.msra.mxu0 0.0
  %245 = vmatprep.subr.mxu0 0.0
  %246 = vmatpush1.msra.mxu0 0.0
  %247 = vmatprep.subr.mxu0 0.0
  %248 = vmatpush1.msra.mxu0 0.0
  %249 = vmatprep.subr.mxu0 0.0
  %250 = vmatpush1.msra.mxu0 0.0
  %251 = vmatprep.subr.mxu0 0.0
  %252 = vmatpush1.msra.mxu0 0.0
  %253 = vmatprep.subr.mxu0 0.0
  %254 = vmatpush1.msra.mxu0 0.0
  %255 = vmatprep.subr.mxu0 0.0
  %256 = vmatpush1.msra.mxu0 0.0
  %257 = vmatprep.subr.mxu0 0.0
  %258 = vmatpush1.msra.mxu0 0.0
  %259 = vmatprep.subr.mxu0 0.0
  %260 = vmatpush1.msra.mxu0 0.0
  %261 = vmatprep.subr.mxu0 0.0
  %262 = vmatpush1.msra.mxu0 0.0
  %263 = vmatprep.subr.mxu0 0.0
  %264 = vmatpush1.msra.mxu0 0.0
  %265 = vmatprep.subr.mxu0 0.0
  %266 = vmatpush1.msra.mxu0 0.0
  %267 = vmatprep.subr.mxu0 0.0
  %268 = vmatpush1.msra.mxu0 0.0
  %269 = vmatprep.subr.mxu0 0.0
  %270 = vmatpush1.msra.mxu0 0.0
  %271 = vmatprep.subr.mxu0 0.0
  %272 = vmatpush1.msra.mxu0 0.0
  %273 = vmatprep.subr.mxu0 0.0
  %274 = vmatpush1.msra.mxu0 0.0
  %275 = vmatprep.subr.mxu0 0.0
  %276 = vmatpush1.msra.mxu0 0.0
  %277 = vmatprep.subr.mxu0 0.0
  %278 = vmatpush1.msra.mxu0 0.0
  %279 = vmatprep.mubr.f32.mxu0 0.0
  %280 = vmatmul.mubr.f32.gmra.mrb[0].mxu0 %v210
  %v281 = vpop.f32.mrb[0].mxu0
  %v282 = vadd.f32 0.0, %v281
  %v283 = vpop.f32.mrb[0].mxu0
  %284 = vmatprep.mubr.f32.mxu0 0.0
  %285 = vmatmul.mubr.f32.gmra.mrb[0].mxu0 %v213
  %v286 = vpop.f32.mrb[0].mxu0
  %v287 = vadd.f32 0.0, %v286
  %v288 = vpop.f32.mrb[0].mxu0
  %289 = vdwg.mxu0
  %v290 = vadd.f32 %v190, %v282
  %v291 = vadd.f32 %v195, %v287
  %v292 = vld [vmem:[%s2] sm:$0x1]
  %v294 = vlaneseq
  %v295 = vshrl.u32 %v294, 7
  %v296 = vsub.s32 0, %v295
  %v297 = vrot.slane %v292, %v296
  %v299 = vadd.f32 %v290, %v297
  %v300 = vadd.f32 %v291, %v297
  %301 = vst [vmem:[%s3] sm:$0xff] %v299
  %302 = vst [vmem:[%s3 + $0x8] sm:$0xff] %v300
  %s303 = scalar_lea.vmem %s0, 24
  %v304 = vld [vmem:[%s303] sm:$0xff]
  %v305 = vld [vmem:[%s303 + $0x8] sm:$0xff]
  %v306 = vld [vmem:[%s1] sm:$0xff]
  %v307 = vld [vmem:[%s1 + $0x8] sm:$0xff]
  %v308 = vld [vmem:[%s1 + $0x10] sm:$0xff]
  %v309 = vld [vmem:[%s1 + $0x18] sm:$0xff]
  %v310 = vld [vmem:[%s1 + $0x20] sm:$0xff]
  %v311 = vld [vmem:[%s1 + $0x28] sm:$0xff]
  %v312 = vld [vmem:[%s1 + $0x30] sm:$0xff]
  %v313 = vld [vmem:[%s1 + $0x38] sm:$0xff]
  %v314 = vld [vmem:[%s303 + $0x1] sm:$0xff]
  %v315 = vld [vmem:[%s303 + $0x9] sm:$0xff]
  %v316 = vld [vmem:[%s26] sm:$0xff]
  %v317 = vld [vmem:[%s26 + $0x8] sm:$0xff]
  %v318 = vld [vmem:[%s26 + $0x10] sm:$0xff]
  %v319 = vld [vmem:[%s26 + $0x18] sm:$0xff]
  %v320 = vld [vmem:[%s26 + $0x20] sm:$0xff]
  %v321 = vld [vmem:[%s26 + $0x28] sm:$0xff]
  %v322 = vld [vmem:[%s26 + $0x30] sm:$0xff]
  %v323 = vld [vmem:[%s26 + $0x38] sm:$0xff]
  %v325 = vsel %vm35, %v314, 0
  %v328 = vsel %vm35, %v315, 0
  %330 = vmatprep.subr.mxu0 0.0
  %331 = vmatpush1.msra.mxu0 %v316
  %332 = vmatprep.subr.mxu0 0.0
  %333 = vmatpush1.msra.mxu0 %v317
  %334 = vmatprep.subr.mxu0 0.0
  %335 = vmatpush1.msra.mxu0 %v318
  %336 = vmatprep.subr.mxu0 0.0
  %337 = vmatpush1.msra.mxu0 %v319
  %338 = vmatprep.subr.mxu0 0.0
  %339 = vmatpush1.msra.mxu0 %v320
  %340 = vmatprep.subr.mxu0 0.0
  %341 = vmatpush1.msra.mxu0 %v321
  %342 = vmatprep.subr.mxu0 0.0
  %343 = vmatpush1.msra.mxu0 %v322
  %344 = vmatprep.subr.mxu0 0.0
  %345 = vmatpush1.msra.mxu0 %v323
  %346 = vmatprep.subr.mxu0 0.0
  %347 = vmatpush1.msra.mxu0 0.0
  %348 = vmatprep.subr.mxu0 0.0
  %349 = vmatpush1.msra.mxu0 0.0
  %350 = vmatprep.subr.mxu0 0.0
  %351 = vmatpush1.msra.mxu0 0.0
  %352 = vmatprep.subr.mxu0 0.0
  %353 = vmatpush1.msra.mxu0 0.0
  %354 = vmatprep.subr.mxu0 0.0
  %355 = vmatpush1.msra.mxu0 0.0
  %356 = vmatprep.subr.mxu0 0.0
  %357 = vmatpush1.msra.mxu0 0.0
  %358 = vmatprep.subr.mxu0 0.0
  %359 = vmatpush1.msra.mxu0 0.0
  %360 = vmatprep.subr.mxu0 0.0
  %361 = vmatpush1.msra.mxu0 0.0
  %362 = vmatprep.subr.mxu0 0.0
  %363 = vmatpush1.msra.mxu0 0.0
  %364 = vmatprep.subr.mxu0 0.0
  %365 = vmatpush1.msra.mxu0 0.0
  %366 = vmatprep.subr.mxu0 0.0
  %367 = vmatpush1.msra.mxu0 0.0
  %368 = vmatprep.subr.mxu0 0.0
  %369 = vmatpush1.msra.mxu0 0.0
  %370 = vmatprep.subr.mxu0 0.0
  %371 = vmatpush1.msra.mxu0 0.0
  %372 = vmatprep.subr.mxu0 0.0
  %373 = vmatpush1.msra.mxu0 0.0
  %374 = vmatprep.subr.mxu0 0.0
  %375 = vmatpush1.msra.mxu0 0.0
  %376 = vmatprep.subr.mxu0 0.0
  %377 = vmatpush1.msra.mxu0 0.0
  %378 = vmatprep.subr.mxu0 0.0
  %379 = vmatpush1.msra.mxu0 0.0
  %380 = vmatprep.subr.mxu0 0.0
  %381 = vmatpush1.msra.mxu0 0.0
  %382 = vmatprep.subr.mxu0 0.0
  %383 = vmatpush1.msra.mxu0 0.0
  %384 = vmatprep.subr.mxu0 0.0
  %385 = vmatpush1.msra.mxu0 0.0
  %386 = vmatprep.subr.mxu0 0.0
  %387 = vmatpush1.msra.mxu0 0.0
  %388 = vmatprep.subr.mxu0 0.0
  %389 = vmatpush1.msra.mxu0 0.0
  %390 = vmatprep.subr.mxu0 0.0
  %391 = vmatpush1.msra.mxu0 0.0
  %392 = vmatprep.subr.mxu0 0.0
  %393 = vmatpush1.msra.mxu0 0.0
  %394 = vmatprep.mubr.f32.mxu0 0.0
  %395 = vmatmul.mubr.f32.gmra.mrb[0].mxu0 %v325
  %v396 = vpop.f32.mrb[0].mxu0
  %v397 = vadd.f32 0.0, %v396
  %v398 = vpop.f32.mrb[0].mxu0
  %399 = vmatprep.mubr.f32.mxu0 0.0
  %400 = vmatmul.mubr.f32.gmra.mrb[0].mxu0 %v328
  %v401 = vpop.f32.mrb[0].mxu0
  %v402 = vadd.f32 0.0, %v401
  %v403 = vpop.f32.mrb[0].mxu0
  %404 = vdwg.mxu0
  %v406 = vsel %vm35, %v304, 0
  %v409 = vsel %vm35, %v305, 0
  %411 = vmatprep.subr.mxu0 0.0
  %412 = vmatpush1.msra.mxu0 %v306
  %413 = vmatprep.subr.mxu0 0.0
  %414 = vmatpush1.msra.mxu0 %v307
  %415 = vmatprep.subr.mxu0 0.0
  %416 = vmatpush1.msra.mxu0 %v308
  %417 = vmatprep.subr.mxu0 0.0
  %418 = vmatpush1.msra.mxu0 %v309
  %419 = vmatprep.subr.mxu0 0.0
  %420 = vmatpush1.msra.mxu0 %v310
  %421 = vmatprep.subr.mxu0 0.0
  %422 = vmatpush1.msra.mxu0 %v311
  %423 = vmatprep.subr.mxu0 0.0
  %424 = vmatpush1.msra.mxu0 %v312
  %425 = vmatprep.subr.mxu0 0.0
  %426 = vmatpush1.msra.mxu0 %v313
  %427 = vmatprep.subr.mxu0 0.0
  %428 = vmatpush1.msra.mxu0 0.0
  %429 = vmatprep.subr.mxu0 0.0
  %430 = vmatpush1.msra.mxu0 0.0
  %431 = vmatprep.subr.mxu0 0.0
  %432 = vmatpush1.msra.mxu0 0.0
  %433 = vmatprep.subr.mxu0 0.0
  %434 = vmatpush1.msra.mxu0 0.0
  %435 = vmatprep.subr.mxu0 0.0
  %436 = vmatpush1.msra.mxu0 0.0
  %437 = vmatprep.subr.mxu0 0.0
  %438 = vmatpush1.msra.mxu0 0.0
  %439 = vmatprep.subr.mxu0 0.0
  %440 = vmatpush1.msra.mxu0 0.0
  %441 = vmatprep.subr.mxu0 0.0
  %442 = vmatpush1.msra.mxu0 0.0
  %443 = vmatprep.subr.mxu0 0.0
  %444 = vmatpush1.msra.mxu0 0.0
  %445 = vmatprep.subr.mxu0 0.0
  %446 = vmatpush1.msra.mxu0 0.0
  %447 = vmatprep.subr.mxu0 0.0
  %448 = vmatpush1.msra.mxu0 0.0
  %449 = vmatprep.subr.mxu0 0.0
  %450 = vmatpush1.msra.mxu0 0.0
  %451 = vmatprep.subr.mxu0 0.0
  %452 = vmatpush1.msra.mxu0 0.0
  %453 = vmatprep.subr.mxu0 0.0
  %454 = vmatpush1.msra.mxu0 0.0
  %455 = vmatprep.subr.mxu0 0.0
  %456 = vmatpush1.msra.mxu0 0.0
  %457 = vmatprep.subr.mxu0 0.0
  %458 = vmatpush1.msra.mxu0 0.0
  %459 = vmatprep.subr.mxu0 0.0
  %460 = vmatpush1.msra.mxu0 0.0
  %461 = vmatprep.subr.mxu0 0.0
  %462 = vmatpush1.msra.mxu0 0.0
  %463 = vmatprep.subr.mxu0 0.0
  %464 = vmatpush1.msra.mxu0 0.0
  %465 = vmatprep.subr.mxu0 0.0
  %466 = vmatpush1.msra.mxu0 0.0
  %467 = vmatprep.subr.mxu0 0.0
  %468 = vmatpush1.msra.mxu0 0.0
  %469 = vmatprep.subr.mxu0 0.0
  %470 = vmatpush1.msra.mxu0 0.0
  %471 = vmatprep.subr.mxu0 0.0
  %472 = vmatpush1.msra.mxu0 0.0
  %473 = vmatprep.subr.mxu0 0.0
  %474 = vmatpush1.msra.mxu0 0.0
  %475 = vmatprep.mubr.f32.mxu0 0.0
  %476 = vmatmul.mubr.f32.gmra.mrb[0].mxu0 %v406
  %v477 = vpop.f32.mrb[0].mxu0
  %v478 = vadd.f32 %v397, %v477
  %v479 = vpop.f32.mrb[0].mxu0
  %480 = vmatprep.mubr.f32.mxu0 0.0
  %481 = vmatmul.mubr.f32.gmra.mrb[0].mxu0 %v409
  %v482 = vpop.f32.mrb[0].mxu0
  %v483 = vadd.f32 %v402, %v482
  %v484 = vpop.f32.mrb[0].mxu0
  %485 = vdwg.mxu0
  %v486 = vld [vmem:[%s303 + $0x2] sm:$0xff]
  %v487 = vld [vmem:[%s303 + $0xa] sm:$0xff]
  %v488 = vld [vmem:[%s200] sm:$0xff]
  %v489 = vld [vmem:[%s200 + $0x8] sm:$0xff]
  %v490 = vld [vmem:[%s200 + $0x10] sm:$0xff]
  %v491 = vld [vmem:[%s200 + $0x18] sm:$0xff]
  %v492 = vld [vmem:[%s200 + $0x20] sm:$0xff]
  %v493 = vld [vmem:[%s200 + $0x28] sm:$0xff]
  %v494 = vld [vmem:[%s200 + $0x30] sm:$0xff]
  %v495 = vld [vmem:[%s200 + $0x38] sm:$0xff]
  %v497 = vsel %vm35, %v486, 0
  %v500 = vsel %vm35, %v487, 0
  %502 = vmatprep.subr.mxu0 0.0
  %503 = vmatpush1.msra.mxu0 %v488
  %504 = vmatprep.subr.mxu0 0.0
  %505 = vmatpush1.msra.mxu0 %v489
  %506 = vmatprep.subr.mxu0 0.0
  %507 = vmatpush1.msra.mxu0 %v490
  %508 = vmatprep.subr.mxu0 0.0
  %509 = vmatpush1.msra.mxu0 %v491
  %510 = vmatprep.subr.mxu0 0.0
  %511 = vmatpush1.msra.mxu0 %v492
  %512 = vmatprep.subr.mxu0 0.0
  %513 = vmatpush1.msra.mxu0 %v493
  %514 = vmatprep.subr.mxu0 0.0
  %515 = vmatpush1.msra.mxu0 %v494
  %516 = vmatprep.subr.mxu0 0.0
  %517 = vmatpush1.msra.mxu0 %v495
  %518 = vmatprep.subr.mxu0 0.0
  %519 = vmatpush1.msra.mxu0 0.0
  %520 = vmatprep.subr.mxu0 0.0
  %521 = vmatpush1.msra.mxu0 0.0
  %522 = vmatprep.subr.mxu0 0.0
  %523 = vmatpush1.msra.mxu0 0.0
  %524 = vmatprep.subr.mxu0 0.0
  %525 = vmatpush1.msra.mxu0 0.0
  %526 = vmatprep.subr.mxu0 0.0
  %527 = vmatpush1.msra.mxu0 0.0
  %528 = vmatprep.subr.mxu0 0.0
  %529 = vmatpush1.msra.mxu0 0.0
  %530 = vmatprep.subr.mxu0 0.0
  %531 = vmatpush1.msra.mxu0 0.0
  %532 = vmatprep.subr.mxu0 0.0
  %533 = vmatpush1.msra.mxu0 0.0
  %534 = vmatprep.subr.mxu0 0.0
  %535 = vmatpush1.msra.mxu0 0.0
  %536 = vmatprep.subr.mxu0 0.0
  %537 = vmatpush1.msra.mxu0 0.0
  %538 = vmatprep.subr.mxu0 0.0
  %539 = vmatpush1.msra.mxu0 0.0
  %540 = vmatprep.subr.mxu0 0.0
  %541 = vmatpush1.msra.mxu0 0.0
  %542 = vmatprep.subr.mxu0 0.0
  %543 = vmatpush1.msra.mxu0 0.0
  %544 = vmatprep.subr.mxu0 0.0
  %545 = vmatpush1.msra.mxu0 0.0
  %546 = vmatprep.subr.mxu0 0.0
  %547 = vmatpush1.msra.mxu0 0.0
  %548 = vmatprep.subr.mxu0 0.0
  %549 = vmatpush1.msra.mxu0 0.0
  %550 = vmatprep.subr.mxu0 0.0
  %551 = vmatpush1.msra.mxu0 0.0
  %552 = vmatprep.subr.mxu0 0.0
  %553 = vmatpush1.msra.mxu0 0.0
  %554 = vmatprep.subr.mxu0 0.0
  %555 = vmatpush1.msra.mxu0 0.0
  %556 = vmatprep.subr.mxu0 0.0
  %557 = vmatpush1.msra.mxu0 0.0
  %558 = vmatprep.subr.mxu0 0.0
  %559 = vmatpush1.msra.mxu0 0.0
  %560 = vmatprep.subr.mxu0 0.0
  %561 = vmatpush1.msra.mxu0 0.0
  %562 = vmatprep.subr.mxu0 0.0
  %563 = vmatpush1.msra.mxu0 0.0
  %564 = vmatprep.subr.mxu0 0.0
  %565 = vmatpush1.msra.mxu0 0.0
  %566 = vmatprep.mubr.f32.mxu0 0.0
  %567 = vmatmul.mubr.f32.gmra.mrb[0].mxu0 %v497
  %v568 = vpop.f32.mrb[0].mxu0
  %v569 = vadd.f32 0.0, %v568
  %v570 = vpop.f32.mrb[0].mxu0
  %571 = vmatprep.mubr.f32.mxu0 0.0
  %572 = vmatmul.mubr.f32.gmra.mrb[0].mxu0 %v500
  %v573 = vpop.f32.mrb[0].mxu0
  %v574 = vadd.f32 0.0, %v573
  %v575 = vpop.f32.mrb[0].mxu0
  %576 = vdwg.mxu0
  %v577 = vadd.f32 %v478, %v569
  %v578 = vadd.f32 %v483, %v574
  %v579 = vld [vmem:[%s2] sm:$0x1]
  %v581 = vlaneseq
  %v582 = vshrl.u32 %v581, 7
  %v583 = vsub.s32 0, %v582
  %v584 = vrot.slane %v579, %v583
  %v586 = vadd.f32 %v577, %v584
  %v587 = vadd.f32 %v578, %v584
  %s588 = scalar_lea.vmem %s3, 16
  %589 = vst [vmem:[%s588] sm:$0xff] %v586
  %590 = vst [vmem:[%s588 + $0x8] sm:$0xff] %v587
  // Predicated region
  $region14: #{qat_wrapper_forward.1} parent=0 // pred_check
    _
  $region15: #{qat_wrapper_forward.1} parent=0 // pred_check_branch
    %592 = sbr.rel (0) target = $region17
  $region16: #{qat_wrapper_forward.1} parent=0 // pred_region
    _
  $region17: #{qat_wrapper_forward.1} parent=0 // pred_fallthru
    _
  // Predicated region
  $region18: #{qat_wrapper_forward.1} parent=0 // pred_check
    _
  $region19: #{qat_wrapper_forward.1} parent=0 // pred_check_branch
    %594 = sbr.rel (0) target = $region21
  $region20: #{qat_wrapper_forward.1} parent=0 // pred_region
    _
  $region21: #{qat_wrapper_forward.1} parent=0 // pred_fallthru
    _

</llo_original>
